<compile_context>
chip_gen: v6e
topology: v6e:2x2x1
jax: 0.10.0
libtpu: 0.0.40
codegen_flags: <defaults>
</compile_context>

<pallas_src>
import jax
import jax.numpy as jnp
from jax.experimental import pallas as pl
from jax.experimental.pallas import tpu as pltpu

HIDDEN = 256  # fixed by the module definition


# ---------------------------------- kernel ----------------------------------

def _critic_fused_kernel(sa_ref, w1_ref, wmat_ref, misc_ref, out_ref):
    """Single invocation; both Q-branches unrolled.

    sa_ref   : (B, S+A)        f32
    w1_ref   : (2, S+A, 256)   bf16   l1 / l4 weights (pre-transposed, x @ W)
    wmat_ref : (4, 256, 256)   bf16   [wvo_b0, w2_b0, wvo_b1, w2_b1]
    misc_ref : (2, 5, 256)     f32    rows: b1, bvo, b2, w3_row, b3(broadcast)
    out_ref  : (B, 2)          f32    column b = Q_{b+1}
    """
    bf16 = jnp.bfloat16
    sa_bf = sa_ref[...].astype(bf16)                                    # (B, S+A)

    def branch(b):
        b1 = misc_ref[b, 0:1, :]                                        # (1, 256)
        bvo = misc_ref[b, 1:2, :]
        b2 = misc_ref[b, 2:3, :]
        w3r = misc_ref[b, 3:4, :]
        b3 = misc_ref[b, 4:5, 0:1]                                      # (1, 1)

        # l1 + ReLU (state/action concat already folded into sa)
        h = jnp.dot(sa_bf, w1_ref[b], preferred_element_type=jnp.float32) + b1
        h = jnp.maximum(h, 0.0)                                         # (B, 256)

        # seq_len == 1 MultiheadAttention == folded V/out projection
        att = jnp.dot(h.astype(bf16), wmat_ref[2 * b],
                      preferred_element_type=jnp.float32) + bvo         # (B, 256)

        # l2 + ReLU
        h2 = jnp.dot(att.astype(bf16), wmat_ref[2 * b + 1],
                     preferred_element_type=jnp.float32) + b2
        h2 = jnp.maximum(h2, 0.0)                                       # (B, 256)

        # l3 as VPU multiply + lane reduction (avoids a (256,1) MXU pass + bad layout)
        return jnp.sum(h2 * w3r, axis=-1, keepdims=True) + b3           # (B, 1)

    out_ref[...] = jnp.concatenate([branch(0), branch(1)], axis=1)      # (B, 2)


def critic_forward(state, action, prep):
    """Both Q-heads in one pallas_call; returns (q1, q2), each (B, 1) float32."""
    B = state.shape[0]
    sa = jnp.concatenate([state, action], axis=1)                       # (B, S+A)

    vmem = lambda: pl.BlockSpec(memory_space=pltpu.MemorySpace.VMEM)
    out = pl.pallas_call(
        _critic_fused_kernel,
        out_shape=jax.ShapeDtypeStruct((B, 2), jnp.float32),
        in_specs=[vmem(), vmem(), vmem(), vmem()],
        out_specs=vmem(),
    )(sa, prep["w1"], prep["wmat"], prep["misc"])

    return out[:, 0:1], out[:, 1:2]


# ------------------------- deterministic parameter init -------------------------

def _init_branch(key, in_dim):
    ks = jax.random.split(key, 10)
    s = 0.05

    def n(k, shape):
        return jax.random.normal(k, shape, dtype=jnp.float32) * s

    # Weights stored pre-transposed (in_features, out_features) so the math is x @ W.
    # MHA Q/K projections are omitted: with seq_len == 1 the attention weight is exactly
    # 1, so they can never influence the forward output.
    return {
        "w1t": n(ks[0], (in_dim, HIDDEN)), "b1": n(ks[1], (1, HIDDEN)),
        "wvt": n(ks[2], (HIDDEN, HIDDEN)), "bv": n(ks[3], (1, HIDDEN)),
        "wot": n(ks[4], (HIDDEN, HIDDEN)), "bo": n(ks[5], (1, HIDDEN)),
        "w2t": n(ks[6], (HIDDEN, HIDDEN)), "b2": n(ks[7], (1, HIDDEN)),
        "w3t": n(ks[8], (HIDDEN, 1)),      "b3": n(ks[9], (1, 1)),
    }


def init_params(key, state_dim, action_dim):
    k1, k2 = jax.random.split(key)
    in_dim = state_dim + action_dim
    return {"branch1": _init_branch(k1, in_dim), "branch2": _init_branch(k2, in_dim)}


def prepare_params(params):
    """Host-side prep: fold V/out projections, pack everything into three slabs."""
    def fold(p):
        wvo = p["wvt"] @ p["wot"]                     # fold V-proj with attn out-proj
        bvo = p["bv"] @ p["wot"] + p["bo"]
        misc = jnp.concatenate([
            p["b1"], bvo, p["b2"],
            p["w3t"].T,                               # (1, 256) row for the VPU reduce
            jnp.broadcast_to(p["b3"], (1, HIDDEN)),   # b3, lane 0 is read in-kernel
        ], axis=0)                                    # (5, 256) f32
        return p["w1t"], wvo, p["w2t"], misc

    w1_1, wvo1, w2_1, misc1 = fold(params["branch1"])
    w1_2, wvo2, w2_2, misc2 = fold(params["branch2"])

    return {
        "w1": jnp.stack([w1_1, w1_2], axis=0).astype(jnp.bfloat16),      # (2, S+A, 256)
        "wmat": jnp.stack([wvo1, w2_1, wvo2, w2_2], axis=0).astype(jnp.bfloat16),
        "misc": jnp.stack([misc1, misc2], axis=0),                       # (2, 5, 256) f32
    }


# ------------------------------ pure-JAX references ------------------------------

def _branch_ref(sa, p):
    """Original-module math in full f32 (seq_len==1 -> attention weights are exactly 1)."""
    h = jnp.maximum(sa @ p["w1t"] + p["b1"], 0.0)
    v = h @ p["wvt"] + p["bv"]
    a = v @ p["wot"] + p["bo"]
    h2 = jnp.maximum(a @ p["w2t"] + p["b2"], 0.0)
    return h2 @ p["w3t"] + p["b3"]


def critic_ref(state, action, params):
    sa = jnp.concatenate([state, action], axis=1)
    return _branch_ref(sa, params["branch1"]), _branch_ref(sa, params["branch2"])


def _prepared_ref(state, action, prep, b):
    """Exact mimic of the kernel math (packed bf16 weights, f32 accumulate)."""
    bf16 = jnp.bfloat16
    mm = lambda x, w: jnp.dot(x.astype(bf16), w, preferred_element_type=jnp.float32)
    sa = jnp.concatenate([state, action], axis=1)
    b1, bvo, b2 = (prep["misc"][b, i:i + 1, :] for i in range(3))
    w3r = prep["misc"][b, 3:4, :]
    b3 = prep["misc"][b, 4:5, 0:1]
    h = jnp.maximum(mm(sa, prep["w1"][b]) + b1, 0.0)
    att = mm(h, prep["wmat"][2 * b]) + bvo
    h2 = jnp.maximum(mm(att, prep["wmat"][2 * b + 1]) + b2, 0.0)
    return jnp.sum(h2 * w3r, axis=-1, keepdims=True) + b3


# ------------------------------------- main -------------------------------------

if __name__ == "__main__":
    B, STATE_DIM, ACTION_DIM = 2, 16, 8

    key = jax.random.PRNGKey(0)
    k_state, k_action, k_params = jax.random.split(key, 3)

    state = jax.random.normal(k_state, (B, STATE_DIM), dtype=jnp.float32)
    action = jax.random.normal(k_action, (B, ACTION_DIM), dtype=jnp.float32)

    raw_params = init_params(k_params, STATE_DIM, ACTION_DIM)
    prep = prepare_params(raw_params)

    forward = jax.jit(critic_forward)
    q1, q2 = forward(state, action, prep)
    q1 = jax.block_until_ready(q1)
    q2 = jax.block_until_ready(q2)
    assert q1.shape == (B, 1) and q2.shape == (B, 1)

    # Tight check: kernel vs. plain-JAX math on the identical packed bf16 weights.
    e1 = _prepared_ref(state, action, prep, 0)
    e2 = _prepared_ref(state, action, prep, 1)
    assert jnp.allclose(q1, e1, atol=1e-4, rtol=1e-4)
    assert jnp.allclose(q2, e2, atol=1e-4, rtol=1e-4)

    # Semantics check: kernel vs. full-precision original-module math (bf16 weights ->
    # small, bounded deviation; tolerance loosened accordingly).
    r1, r2 = critic_ref(state, action, raw_params)
    assert jnp.allclose(q1, r1, atol=1e-2, rtol=1e-2)
    assert jnp.allclose(q2, r2, atol=1e-2, rtol=1e-2)

    print("KERNEL_OK")
</pallas_src>

<mosaic_0001>
module attributes {stable_mosaic.version = 11 : i64} {
  func.func @_critic_fused_kernel(%arg0: memref<2x24xf32, #tpu.memory_space<vmem>>, %arg1: memref<2x24x256xbf16, #tpu.memory_space<vmem>>, %arg2: memref<4x256x256xbf16, #tpu.memory_space<vmem>>, %arg3: memref<2x5x256xf32, #tpu.memory_space<vmem>>, %arg4: memref<2x2xf32, #tpu.memory_space<vmem>>) attributes {dimension_semantics = [], scalar_prefetch = 0 : i64, scratch_operands = 0 : i64, tpu.core_type = #tpu.core_type<tc>} {
    %c0 = arith.constant 0 : index
    %c0_0 = arith.constant 0 : index
    %0 = vector.load %arg0[%c0, %c0_0] : memref<2x24xf32, #tpu.memory_space<vmem>>, vector<2x24xf32>
    %1 = arith.truncf %0 : vector<2x24xf32> to vector<2x24xbf16>
    %c0_1 = arith.constant 0 : index
    %c0_2 = arith.constant 0 : index
    %c0_3 = arith.constant 0 : index
    %2 = vector.load %arg3[%c0_1, %c0_2, %c0_3] : memref<2x5x256xf32, #tpu.memory_space<vmem>>, vector<1x1x256xf32>
    %3 = vector.shape_cast %2 : vector<1x1x256xf32> to vector<1x256xf32>
    %c0_4 = arith.constant 0 : index
    %c1 = arith.constant 1 : index
    %c0_5 = arith.constant 0 : index
    %4 = vector.load %arg3[%c0_4, %c1, %c0_5] : memref<2x5x256xf32, #tpu.memory_space<vmem>>, vector<1x1x256xf32>
    %5 = vector.shape_cast %4 : vector<1x1x256xf32> to vector<1x256xf32>
    %c0_6 = arith.constant 0 : index
    %c2 = arith.constant 2 : index
    %c0_7 = arith.constant 0 : index
    %6 = vector.load %arg3[%c0_6, %c2, %c0_7] : memref<2x5x256xf32, #tpu.memory_space<vmem>>, vector<1x1x256xf32>
    %7 = vector.shape_cast %6 : vector<1x1x256xf32> to vector<1x256xf32>
    %c0_8 = arith.constant 0 : index
    %c3 = arith.constant 3 : index
    %c0_9 = arith.constant 0 : index
    %8 = vector.load %arg3[%c0_8, %c3, %c0_9] : memref<2x5x256xf32, #tpu.memory_space<vmem>>, vector<1x1x256xf32>
    %9 = vector.shape_cast %8 : vector<1x1x256xf32> to vector<1x256xf32>
    %c0_10 = arith.constant 0 : index
    %c4 = arith.constant 4 : index
    %c0_11 = arith.constant 0 : index
    %10 = vector.load %arg3[%c0_10, %c4, %c0_11] : memref<2x5x256xf32, #tpu.memory_space<vmem>>, vector<1x1x1xf32>
    %11 = vector.shape_cast %10 : vector<1x1x1xf32> to vector<1x1xf32>
    %c0_12 = arith.constant 0 : index
    %c0_13 = arith.constant 0 : index
    %c0_14 = arith.constant 0 : index
    %12 = vector.load %arg1[%c0_12, %c0_13, %c0_14] : memref<2x24x256xbf16, #tpu.memory_space<vmem>>, vector<1x24x256xbf16>
    %13 = vector.shape_cast %12 : vector<1x24x256xbf16> to vector<24x256xbf16>
    %cst = arith.constant dense<0.000000e+00> : vector<2x256xf32>
    %14 = tpu.matmul %1, %13, %cst {dimension_numbers = #tpu.dot_dimension_numbers<[1], [0], [0], [1], [0, 0, 1, 1], [], []>} : vector<2x24xbf16>, vector<24x256xbf16>, vector<2x256xf32> -> vector<2x256xf32>
    %15 = vector.broadcast %3 : vector<1x256xf32> to vector<2x256xf32>
    %16 = arith.addf %14, %15 : vector<2x256xf32>
    %cst_15 = arith.constant 0.000000e+00 : f32
    %17 = vector.broadcast %cst_15 : f32 to vector<2x256xf32>
    %18 = arith.maximumf %16, %17 : vector<2x256xf32>
    %19 = arith.truncf %18 : vector<2x256xf32> to vector<2x256xbf16>
    %c0_16 = arith.constant 0 : index
    %c0_17 = arith.constant 0 : index
    %c0_18 = arith.constant 0 : index
    %20 = vector.load %arg2[%c0_16, %c0_17, %c0_18] : memref<4x256x256xbf16, #tpu.memory_space<vmem>>, vector<1x256x256xbf16>
    %21 = vector.shape_cast %20 : vector<1x256x256xbf16> to vector<256x256xbf16>
    %cst_19 = arith.constant dense<0.000000e+00> : vector<2x256xf32>
    %22 = tpu.matmul %19, %21, %cst_19 {dimension_numbers = #tpu.dot_dimension_numbers<[1], [0], [0], [1], [0, 0, 1, 1], [], []>} : vector<2x256xbf16>, vector<256x256xbf16>, vector<2x256xf32> -> vector<2x256xf32>
    %23 = vector.broadcast %5 : vector<1x256xf32> to vector<2x256xf32>
    %24 = arith.addf %22, %23 : vector<2x256xf32>
    %25 = arith.truncf %24 : vector<2x256xf32> to vector<2x256xbf16>
    %c1_20 = arith.constant 1 : index
    %c0_21 = arith.constant 0 : index
    %c0_22 = arith.constant 0 : index
    %26 = vector.load %arg2[%c1_20, %c0_21, %c0_22] : memref<4x256x256xbf16, #tpu.memory_space<vmem>>, vector<1x256x256xbf16>
    %27 = vector.shape_cast %26 : vector<1x256x256xbf16> to vector<256x256xbf16>
    %cst_23 = arith.constant dense<0.000000e+00> : vector<2x256xf32>
    %28 = tpu.matmul %25, %27, %cst_23 {dimension_numbers = #tpu.dot_dimension_numbers<[1], [0], [0], [1], [0, 0, 1, 1], [], []>} : vector<2x256xbf16>, vector<256x256xbf16>, vector<2x256xf32> -> vector<2x256xf32>
    %29 = vector.broadcast %7 : vector<1x256xf32> to vector<2x256xf32>
    %30 = arith.addf %28, %29 : vector<2x256xf32>
    %cst_24 = arith.constant 0.000000e+00 : f32
    %31 = vector.broadcast %cst_24 : f32 to vector<2x256xf32>
    %32 = arith.maximumf %30, %31 : vector<2x256xf32>
    %33 = vector.broadcast %9 : vector<1x256xf32> to vector<2x256xf32>
    %34 = arith.mulf %32, %33 : vector<2x256xf32>
    %cst_25 = arith.constant dense<0.000000e+00> : vector<2xf32>
    %35 = vector.multi_reduction <add>, %34, %cst_25 [1] : vector<2x256xf32> to vector<2xf32>
    %36 = vector.shape_cast %35 : vector<2xf32> to vector<2x1xf32>
    %37 = vector.broadcast %11 : vector<1x1xf32> to vector<2x1xf32>
    %38 = arith.addf %36, %37 : vector<2x1xf32>
    %c1_26 = arith.constant 1 : index
    %c0_27 = arith.constant 0 : index
    %c0_28 = arith.constant 0 : index
    %39 = vector.load %arg3[%c1_26, %c0_27, %c0_28] : memref<2x5x256xf32, #tpu.memory_space<vmem>>, vector<1x1x256xf32>
    %40 = vector.shape_cast %39 : vector<1x1x256xf32> to vector<1x256xf32>
    %c1_29 = arith.constant 1 : index
    %c1_30 = arith.constant 1 : index
    %c0_31 = arith.constant 0 : index
    %41 = vector.load %arg3[%c1_29, %c1_30, %c0_31] : memref<2x5x256xf32, #tpu.memory_space<vmem>>, vector<1x1x256xf32>
    %42 = vector.shape_cast %41 : vector<1x1x256xf32> to vector<1x256xf32>
    %c1_32 = arith.constant 1 : index
    %c2_33 = arith.constant 2 : index
    %c0_34 = arith.constant 0 : index
    %43 = vector.load %arg3[%c1_32, %c2_33, %c0_34] : memref<2x5x256xf32, #tpu.memory_space<vmem>>, vector<1x1x256xf32>
    %44 = vector.shape_cast %43 : vector<1x1x256xf32> to vector<1x256xf32>
    %c1_35 = arith.constant 1 : index
    %c3_36 = arith.constant 3 : index
    %c0_37 = arith.constant 0 : index
    %45 = vector.load %arg3[%c1_35, %c3_36, %c0_37] : memref<2x5x256xf32, #tpu.memory_space<vmem>>, vector<1x1x256xf32>
    %46 = vector.shape_cast %45 : vector<1x1x256xf32> to vector<1x256xf32>
    %c1_38 = arith.constant 1 : index
    %c4_39 = arith.constant 4 : index
    %c0_40 = arith.constant 0 : index
    %47 = vector.load %arg3[%c1_38, %c4_39, %c0_40] : memref<2x5x256xf32, #tpu.memory_space<vmem>>, vector<1x1x1xf32>
    %48 = vector.shape_cast %47 : vector<1x1x1xf32> to vector<1x1xf32>
    %c1_41 = arith.constant 1 : index
    %c0_42 = arith.constant 0 : index
    %c0_43 = arith.constant 0 : index
    %49 = vector.load %arg1[%c1_41, %c0_42, %c0_43] : memref<2x24x256xbf16, #tpu.memory_space<vmem>>, vector<1x24x256xbf16>
    %50 = vector.shape_cast %49 : vector<1x24x256xbf16> to vector<24x256xbf16>
    %cst_44 = arith.constant dense<0.000000e+00> : vector<2x256xf32>
    %51 = tpu.matmul %1, %50, %cst_44 {dimension_numbers = #tpu.dot_dimension_numbers<[1], [0], [0], [1], [0, 0, 1, 1], [], []>} : vector<2x24xbf16>, vector<24x256xbf16>, vector<2x256xf32> -> vector<2x256xf32>
    %52 = vector.broadcast %40 : vector<1x256xf32> to vector<2x256xf32>
    %53 = arith.addf %51, %52 : vector<2x256xf32>
    %cst_45 = arith.constant 0.000000e+00 : f32
    %54 = vector.broadcast %cst_45 : f32 to vector<2x256xf32>
    %55 = arith.maximumf %53, %54 : vector<2x256xf32>
    %56 = arith.truncf %55 : vector<2x256xf32> to vector<2x256xbf16>
    %c2_46 = arith.constant 2 : index
    %c0_47 = arith.constant 0 : index
    %c0_48 = arith.constant 0 : index
    %57 = vector.load %arg2[%c2_46, %c0_47, %c0_48] : memref<4x256x256xbf16, #tpu.memory_space<vmem>>, vector<1x256x256xbf16>
    %58 = vector.shape_cast %57 : vector<1x256x256xbf16> to vector<256x256xbf16>
    %cst_49 = arith.constant dense<0.000000e+00> : vector<2x256xf32>
    %59 = tpu.matmul %56, %58, %cst_49 {dimension_numbers = #tpu.dot_dimension_numbers<[1], [0], [0], [1], [0, 0, 1, 1], [], []>} : vector<2x256xbf16>, vector<256x256xbf16>, vector<2x256xf32> -> vector<2x256xf32>
    %60 = vector.broadcast %42 : vector<1x256xf32> to vector<2x256xf32>
    %61 = arith.addf %59, %60 : vector<2x256xf32>
    %62 = arith.truncf %61 : vector<2x256xf32> to vector<2x256xbf16>
    %c3_50 = arith.constant 3 : index
    %c0_51 = arith.constant 0 : index
    %c0_52 = arith.constant 0 : index
    %63 = vector.load %arg2[%c3_50, %c0_51, %c0_52] : memref<4x256x256xbf16, #tpu.memory_space<vmem>>, vector<1x256x256xbf16>
    %64 = vector.shape_cast %63 : vector<1x256x256xbf16> to vector<256x256xbf16>
    %cst_53 = arith.constant dense<0.000000e+00> : vector<2x256xf32>
    %65 = tpu.matmul %62, %64, %cst_53 {dimension_numbers = #tpu.dot_dimension_numbers<[1], [0], [0], [1], [0, 0, 1, 1], [], []>} : vector<2x256xbf16>, vector<256x256xbf16>, vector<2x256xf32> -> vector<2x256xf32>
    %66 = vector.broadcast %44 : vector<1x256xf32> to vector<2x256xf32>
    %67 = arith.addf %65, %66 : vector<2x256xf32>
    %cst_54 = arith.constant 0.000000e+00 : f32
    %68 = vector.broadcast %cst_54 : f32 to vector<2x256xf32>
    %69 = arith.maximumf %67, %68 : vector<2x256xf32>
    %70 = vector.broadcast %46 : vector<1x256xf32> to vector<2x256xf32>
    %71 = arith.mulf %69, %70 : vector<2x256xf32>
    %cst_55 = arith.constant dense<0.000000e+00> : vector<2xf32>
    %72 = vector.multi_reduction <add>, %71, %cst_55 [1] : vector<2x256xf32> to vector<2xf32>
    %73 = vector.shape_cast %72 : vector<2xf32> to vector<2x1xf32>
    %74 = vector.broadcast %48 : vector<1x1xf32> to vector<2x1xf32>
    %75 = arith.addf %73, %74 : vector<2x1xf32>
    %76 = tpu.concatenate %38, %75 in 1 : vector<2x1xf32>, vector<2x1xf32> -> vector<2x2xf32>
    %c0_56 = arith.constant 0 : index
    %c0_57 = arith.constant 0 : index
    %77 = vector.load %arg4[%c0_56, %c0_57] : memref<2x2xf32, #tpu.memory_space<vmem>>, vector<2x2xf32>
    tpu.vector_store %arg4[%c0_56, %c0_57], %76 {strides = array<i32>} : memref<2x2xf32, #tpu.memory_space<vmem>>, vector<2x2xf32>,
    return
  }
}

</mosaic_0001>

<llo_original>
// kernel: critic_forward.1
$region0: #{critic_forward.1}
  #allocation0 [shape = 'u32[]', space=smem, size = 0x4, offset = 0x4, fixed_abs, tag = 'smem constant byte address 0x4 - core index']
  #allocation1 [shape = 'u32[144,128]{1,0:T(1,128)}', space=vmem, size = 0x12000, scoped, tag = 'internal scratch']
  %s0 = inlined_call_operand.vmem [shape: f32[2,24], index: 0, kind: input, shape index: {}]
  %s1 = inlined_call_operand.vmem [shape: bf16[2,24,256], index: 1, kind: input, shape index: {}]
  %s2 = inlined_call_operand.hbm [shape: bf16[4,256,256], index: 2, kind: input, shape index: {}]
  %s3 = inlined_call_operand.vmem [shape: f32[2,5,256], index: 3, kind: input, shape index: {}]
  %s4 = inlined_call_operand.vmem [shape: f32[2,2], index: 4, kind: output, shape index: {}]
  %s5 = sld [smem:[#allocation0]]
  $region30: #{critic_forward.1} parent=0
    _
  %s7 = ssub.s32 1, %s5
  %s8 = scalar_select 0, %s7, %s5
  $region1: #{critic_forward.1} parent=0
    #allocation2 [shape = 'u8[524288]{0}', space=vmem, size = 0x80000, scoped, tag = 'input window, operand 2, single buffered']
    #allocation3 [shape = 's32[1]{0}', space=sflag, size = 0x4, scoped, tag = 'scoped memory for critic_forward.1']
    %9 = vsyncpa [#allocation3], 0
    // Predicated region
    $region2: #{critic_forward.1} parent=1 // pred_check
      _
    $region3: #{critic_forward.1} parent=1 // pred_check_branch
      %11 = sbr.rel (0) target = $region5
    $region4: #{critic_forward.1} parent=1 // pred_region
      _
    $region5: #{critic_forward.1} parent=1 // pred_fallthru
      _
    // Predicated region
    $region6: #{critic_forward.1} parent=1 // pred_check
      _
    $region7: #{critic_forward.1} parent=1 // pred_check_branch
      %13 = sbr.rel (0) target = $region9
    $region8: #{critic_forward.1} parent=1 // pred_region
      _
    $region9: #{critic_forward.1} parent=1 // pred_fallthru
      _
    // Predicated region
    $region10: #{critic_forward.1} parent=1 // pred_check
      _
    $region11: #{critic_forward.1} parent=1 // pred_check_branch
      %15 = sbr.rel (0) target = $region13
    $region12: #{critic_forward.1} parent=1 // pred_region
      %s17 = ssub.s32 16384, 16384
      %18 = vsyncadd [#allocation3], %s17
      %s19 = sshll.u32 [#allocation2], 4
      %s20 = int_to_ptr.vmem [resolvable:$true] %s19
      %25 = dma.hbm_to_vmem [thread:$0]  %s2, 16384, %s20, [#allocation3], 128, 128, 8
    $region13: #{critic_forward.1} parent=1 // pred_fallthru
      _
    // Predicated region
    $region14: #{critic_forward.1} parent=1 // pred_check
      _
    $region15: #{critic_forward.1} parent=1 // pred_check_branch
      %27 = sbr.rel (0) target = $region17
    $region16: #{critic_forward.1} parent=1 // pred_region
      _
    $region17: #{critic_forward.1} parent=1 // pred_fallthru
      _
    // Predicated region
    $region18: #{critic_forward.1} parent=1 // pred_check
      _
    $region19: #{critic_forward.1} parent=1 // pred_check_branch
      %29 = sbr.rel (0) target = $region21
    $region20: #{critic_forward.1} parent=1 // pred_region
      %30 = dma.done [#allocation3], 16384
    $region21: #{critic_forward.1} parent=1 // pred_fallthru
      _
    %v32 = vld [vmem:[%s0] sm:$0x3]
    %v33 = vpack.c.bf16 %v32, %v32
    %v34 = vld [vmem:[%s3] ss:$8 sm:$0x3]
    %s35 = scalar_lea.vmem %s3, 1
    %v36 = vld [vmem:[%s35] ss:$8 sm:$0x3]
    %s37 = scalar_lea.vmem %s3, 2
    %v38 = vld [vmem:[%s37] ss:$8 sm:$0x3]
    %s39 = scalar_lea.vmem %s3, 3
    %v40 = vld [vmem:[%s39] ss:$8 sm:$0x3]
    %v41 = vld [vmem:[%s3 + $0x4] ss:$0 sm:$0xff]
    %v42 = vld [vmem:[%s1] sm:$0xff]
    %v43 = vld [vmem:[%s1 + $0x8] sm:$0xff]
    %v44 = vld [vmem:[%s1 + $0x10] sm:$0xff]
    %v46 = vlaneseq
    %v47 = vshrl.u32 %v46, 7
    %v48 = vsub.s32 0, %v47
    %v49 = vrot.slane %v34, %v48
    %v50 = vlaneseq
    %v51 = vshrl.u32 %v50, 7
    %v52 = vsub.s32 1, %v51
    %v53 = vrot.slane %v34, %v52
    %v59 = vunpack.c.l.b16 %v42
    %v60 = vunpack.c.h.b16 %v42
    %v61 = vunpack.c.l.b16 %v43
    %v62 = vunpack.c.h.b16 %v43
    %v63 = vunpack.c.l.b16 %v44
    %v64 = vunpack.c.h.b16 %v44
    %v65 = vpack.c.b16 %v61, %v59
    %v66 = vpack.c.b16 %v62, %v60
    %v67 = vpack.c.b16 %v63, %v63
    %v68 = vpack.c.b16 %v64, %v64
    %vm71 = vcmask 195584
    %v73 = vsel %vm71, %v33, 0
    %vm75 = vcmask 1043456
    %v77 = vsel %vm75, %v67, 0
    %v80 = vsel %vm75, %v68, 0
    %82 = vmatprep.subr.bf16.mxu0 0
    %83 = vmatpush1.bf16.msra.mxu0 0
    %84 = vmatprep.subr.bf16.mxu0 0
    %85 = vmatpush1.bf16.msra.mxu0 0
    %86 = vmatprep.subr.bf16.mxu0 0
    %87 = vmatpush1.bf16.msra.mxu0 0
    %88 = vmatprep.subr.bf16.mxu0 0
    %89 = vmatpush1.bf16.msra.mxu0 0
    %90 = vmatprep.subr.bf16.mxu0 0
    %91 = vmatpush1.bf16.msra.mxu0 0
    %92 = vmatprep.subr.bf16.mxu0 0
    %93 = vmatpush1.bf16.msra.mxu0 0
    %94 = vmatprep.subr.bf16.mxu0 %v80
    %95 = vmatpush1.bf16.msra.mxu0 %v77
    %96 = vmatprep.subr.bf16.mxu0 %v66
    %97 = vmatpush1.bf16.msra.mxu0 %v65
    %98 = vmatprep.subr.bf16.mxu0 0
    %99 = vmatpush2.bf16.msra.mxu0 0
    %100 = vmatprep.subr.bf16.mxu0 0
    %101 = vmatpush2.bf16.msra.mxu0 0
    %102 = vmatprep.subr.bf16.mxu0 0
    %103 = vmatpush2.bf16.msra.mxu0 0
    %104 = vmatprep.subr.bf16.mxu0 0
    %105 = vmatpush2.bf16.msra.mxu0 0
    %106 = vmatprep.subr.bf16.mxu0 0
    %107 = vmatpush2.bf16.msra.mxu0 0
    %108 = vmatprep.subr.bf16.mxu0 0
    %109 = vmatpush2.bf16.msra.mxu0 0
    %110 = vmatprep.subr.bf16.mxu0 0
    %111 = vmatpush2.bf16.msra.mxu0 0
    %112 = vmatprep.subr.bf16.mxu0 0
    %113 = vmatpush2.bf16.msra.mxu0 0
    %114 = vmatprep.mubr.bf16.mxu0 0
    %115 = vmatmul.mubr.bf16.gmra.mxu0 %v73
    %v116 = vpop.f32.mrf.mxu0
    %v117 = vadd.f32 %v49, %v116
    %v118 = vpop.f32.mrf.mxu0
    %v119 = vadd.f32 %v53, %v118
    %v120 = vpop.f32.mrf.mxu0
    %v121 = vpop.f32.mrf.mxu0
    %122 = vdwg.mxu0
    %v123 = vmax.f32 %v117, 0.0
    %v124 = vmax.f32 %v119, 0.0
    %v125 = vpack.c.bf16 %v123, %v123
    %v126 = vpack.c.bf16 %v124, %v124
    %v127 = vld [vmem:[#allocation2] sm:$0xff]
    %v128 = vld [vmem:[#allocation2 + $0x8] sm:$0xff]
    %v129 = vld [vmem:[#allocation2 + $0x10] sm:$0xff]
    %v130 = vld [vmem:[#allocation2 + $0x18] sm:$0xff]
    %v131 = vld [vmem:[#allocation2 + $0x20] sm:$0xff]
    %v132 = vld [vmem:[#allocation2 + $0x28] sm:$0xff]
    %v133 = vld [vmem:[#allocation2 + $0x30] sm:$0xff]
    %v134 = vld [vmem:[#allocation2 + $0x38] sm:$0xff]
    %v135 = vld [vmem:[#allocation2 + $0x40] sm:$0xff]
    %v136 = vld [vmem:[#allocation2 + $0x48] sm:$0xff]
    %v137 = vld [vmem:[#allocation2 + $0x50] sm:$0xff]
    %v138 = vld [vmem:[#allocation2 + $0x58] sm:$0xff]
    %v139 = vld [vmem:[#allocation2 + $0x60] sm:$0xff]
    %v140 = vld [vmem:[#allocation2 + $0x68] sm:$0xff]
    %v141 = vld [vmem:[#allocation2 + $0x70] sm:$0xff]
    %v142 = vld [vmem:[#allocation2 + $0x78] sm:$0xff]
    %v143 = vld [vmem:[#allocation2 + $0x80] sm:$0xff]
    %v144 = vld [vmem:[#allocation2 + $0x88] sm:$0xff]
    %v145 = vld [vmem:[#allocation2 + $0x90] sm:$0xff]
    %v146 = vld [vmem:[#allocation2 + $0x98] sm:$0xff]
    %v147 = vld [vmem:[#allocation2 + $0xa0] sm:$0xff]
    %v148 = vld [vmem:[#allocation2 + $0xa8] sm:$0xff]
    %v149 = vld [vmem:[#allocation2 + $0xb0] sm:$0xff]
    %v150 = vld [vmem:[#allocation2 + $0xb8] sm:$0xff]
    %v151 = vld [vmem:[#allocation2 + $0xc0] sm:$0xff]
    %v152 = vld [vmem:[#allocation2 + $0xc8] sm:$0xff]
    %v153 = vld [vmem:[#allocation2 + $0xd0] sm:$0xff]
    %v154 = vld [vmem:[#allocation2 + $0xd8] sm:$0xff]
    %v155 = vld [vmem:[#allocation2 + $0xe0] sm:$0xff]
    %v156 = vld [vmem:[#allocation2 + $0xe8] sm:$0xff]
    %v157 = vld [vmem:[#allocation2 + $0xf0] sm:$0xff]
    %v158 = vld [vmem:[#allocation2 + $0xf8] sm:$0xff]
    %v160 = vlaneseq
    %v161 = vshrl.u32 %v160, 7
    %v162 = vsub.s32 0, %v161
    %v163 = vrot.slane %v36, %v162
    %v164 = vlaneseq
    %v165 = vshrl.u32 %v164, 7
    %v166 = vsub.s32 1, %v165
    %v167 = vrot.slane %v36, %v166
    %v202 = vunpack.c.l.b16 %v127
    %v203 = vunpack.c.h.b16 %v127
    %v204 = vunpack.c.l.b16 %v128
    %v205 = vunpack.c.h.b16 %v128
    %v206 = vunpack.c.l.b16 %v129
    %v207 = vunpack.c.h.b16 %v129
    %v208 = vunpack.c.l.b16 %v130
    %v209 = vunpack.c.h.b16 %v130
    %v210 = vunpack.c.l.b16 %v131
    %v211 = vunpack.c.h.b16 %v131
    %v212 = vunpack.c.l.b16 %v132
    %v213 = vunpack.c.h.b16 %v132
    %v214 = vunpack.c.l.b16 %v133
    %v215 = vunpack.c.h.b16 %v133
    %v216 = vunpack.c.l.b16 %v134
    %v217 = vunpack.c.h.b16 %v134
    %v218 = vunpack.c.l.b16 %v135
    %v219 = vunpack.c.h.b16 %v135
    %v220 = vunpack.c.l.b16 %v136
    %v221 = vunpack.c.h.b16 %v136
    %v222 = vunpack.c.l.b16 %v137
    %v223 = vunpack.c.h.b16 %v137
    %v224 = vunpack.c.l.b16 %v138
    %v225 = vunpack.c.h.b16 %v138
    %v226 = vunpack.c.l.b16 %v139
    %v227 = vunpack.c.h.b16 %v139
    %v228 = vunpack.c.l.b16 %v140
    %v229 = vunpack.c.h.b16 %v140
    %v230 = vunpack.c.l.b16 %v141
    %v231 = vunpack.c.h.b16 %v141
    %v232 = vunpack.c.l.b16 %v142
    %v233 = vunpack.c.h.b16 %v142
    %v234 = vunpack.c.l.b16 %v143
    %v235 = vunpack.c.h.b16 %v143
    %v236 = vunpack.c.l.b16 %v144
    %v237 = vunpack.c.h.b16 %v144
    %v238 = vunpack.c.l.b16 %v145
    %v239 = vunpack.c.h.b16 %v145
    %v240 = vunpack.c.l.b16 %v146
    %v241 = vunpack.c.h.b16 %v146
    %v242 = vunpack.c.l.b16 %v147
    %v243 = vunpack.c.h.b16 %v147
    %v244 = vunpack.c.l.b16 %v148
    %v245 = vunpack.c.h.b16 %v148
    %v246 = vunpack.c.l.b16 %v149
    %v247 = vunpack.c.h.b16 %v149
    %v248 = vunpack.c.l.b16 %v150
    %v249 = vunpack.c.h.b16 %v150
    %v250 = vunpack.c.l.b16 %v151
    %v251 = vunpack.c.h.b16 %v151
    %v252 = vunpack.c.l.b16 %v152
    %v253 = vunpack.c.h.b16 %v152
    %v254 = vunpack.c.l.b16 %v153
    %v255 = vunpack.c.h.b16 %v153
    %v256 = vunpack.c.l.b16 %v154
    %v257 = vunpack.c.h.b16 %v154
    %v258 = vunpack.c.l.b16 %v155
    %v259 = vunpack.c.h.b16 %v155
    %v260 = vunpack.c.l.b16 %v156
    %v261 = vunpack.c.h.b16 %v156
    %v262 = vunpack.c.l.b16 %v157
    %v263 = vunpack.c.h.b16 %v157
    %v264 = vunpack.c.l.b16 %v158
    %v265 = vunpack.c.h.b16 %v158
    %v266 = vpack.c.b16 %v204, %v202
    %v267 = vpack.c.b16 %v205, %v203
    %v268 = vpack.c.b16 %v208, %v206
    %v269 = vpack.c.b16 %v209, %v207
    %v270 = vpack.c.b16 %v212, %v210
    %v271 = vpack.c.b16 %v213, %v211
    %v272 = vpack.c.b16 %v216, %v214
    %v273 = vpack.c.b16 %v217, %v215
    %v274 = vpack.c.b16 %v220, %v218
    %v275 = vpack.c.b16 %v221, %v219
    %v276 = vpack.c.b16 %v224, %v222
    %v277 = vpack.c.b16 %v225, %v223
    %v278 = vpack.c.b16 %v228, %v226
    %v279 = vpack.c.b16 %v229, %v227
    %v280 = vpack.c.b16 %v232, %v230
    %v281 = vpack.c.b16 %v233, %v231
    %v282 = vpack.c.b16 %v236, %v234
    %v283 = vpack.c.b16 %v237, %v235
    %v284 = vpack.c.b16 %v240, %v238
    %v285 = vpack.c.b16 %v241, %v239
    %v286 = vpack.c.b16 %v244, %v242
    %v287 = vpack.c.b16 %v245, %v243
    %v288 = vpack.c.b16 %v248, %v246
    %v289 = vpack.c.b16 %v249, %v247
    %v290 = vpack.c.b16 %v252, %v250
    %v291 = vpack.c.b16 %v253, %v251
    %v292 = vpack.c.b16 %v256, %v254
    %v293 = vpack.c.b16 %v257, %v255
    %v294 = vpack.c.b16 %v260, %v258
    %v295 = vpack.c.b16 %v261, %v259
    %v296 = vpack.c.b16 %v264, %v262
    %v297 = vpack.c.b16 %v265, %v263
    %330 = vmatprep.subr.bf16.mxu0 %v281
    %331 = vmatpush1.bf16.msra.mxu0 %v280
    %332 = vmatprep.subr.bf16.mxu0 %v279
    %333 = vmatpush1.bf16.msra.mxu0 %v278
    %334 = vmatprep.subr.bf16.mxu0 %v277
    %335 = vmatpush1.bf16.msra.mxu0 %v276
    %336 = vmatprep.subr.bf16.mxu0 %v275
    %337 = vmatpush1.bf16.msra.mxu0 %v274
    %338 = vmatprep.subr.bf16.mxu0 %v273
    %339 = vmatpush1.bf16.msra.mxu0 %v272
    %340 = vmatprep.subr.bf16.mxu0 %v271
    %341 = vmatpush1.bf16.msra.mxu0 %v270
    %342 = vmatprep.subr.bf16.mxu0 %v269
    %343 = vmatpush1.bf16.msra.mxu0 %v268
    %344 = vmatprep.subr.bf16.mxu0 %v267
    %345 = vmatpush1.bf16.msra.mxu0 %v266
    %346 = vmatprep.subr.bf16.mxu0 %v297
    %347 = vmatpush2.bf16.msra.mxu0 %v296
    %348 = vmatprep.subr.bf16.mxu0 %v295
    %349 = vmatpush2.bf16.msra.mxu0 %v294
    %350 = vmatprep.subr.bf16.mxu0 %v293
    %351 = vmatpush2.bf16.msra.mxu0 %v292
    %352 = vmatprep.subr.bf16.mxu0 %v291
    %353 = vmatpush2.bf16.msra.mxu0 %v290
    %354 = vmatprep.subr.bf16.mxu0 %v289
    %355 = vmatpush2.bf16.msra.mxu0 %v288
    %356 = vmatprep.subr.bf16.mxu0 %v287
    %357 = vmatpush2.bf16.msra.mxu0 %v286
    %358 = vmatprep.subr.bf16.mxu0 %v285
    %359 = vmatpush2.bf16.msra.mxu0 %v284
    %360 = vmatprep.subr.bf16.mxu0 %v283
    %361 = vmatpush2.bf16.msra.mxu0 %v282
    %362 = vmatprep.mubr.bf16.mxu0 %v126
    %363 = vmatmul.mubr.bf16.gmra.mxu0 %v125
    %v364 = vpop.f32.mrf.mxu0
    %v365 = vadd.f32 %v163, %v364
    %v366 = vpop.f32.mrf.mxu0
    %v367 = vadd.f32 %v167, %v366
    %v368 = vpop.f32.mrf.mxu0
    %v369 = vpop.f32.mrf.mxu0
    %370 = vdwg.mxu0
    %v371 = vpack.c.bf16 %v365, %v365
    %v372 = vpack.c.bf16 %v367, %v367
    %s373 = scalar_lea.vmem [#allocation2], 256
    %v374 = vld [vmem:[%s373] sm:$0xff]
    %v375 = vld [vmem:[%s373 + $0x8] sm:$0xff]
    %v376 = vld [vmem:[%s373 + $0x10] sm:$0xff]
    %v377 = vld [vmem:[%s373 + $0x18] sm:$0xff]
    %v378 = vld [vmem:[%s373 + $0x20] sm:$0xff]
    %v379 = vld [vmem:[%s373 + $0x28] sm:$0xff]
    %v380 = vld [vmem:[%s373 + $0x30] sm:$0xff]
    %v381 = vld [vmem:[%s373 + $0x38] sm:$0xff]
    %v382 = vld [vmem:[%s373 + $0x40] sm:$0xff]
    %v383 = vld [vmem:[%s373 + $0x48] sm:$0xff]
    %v384 = vld [vmem:[%s373 + $0x50] sm:$0xff]
    %v385 = vld [vmem:[%s373 + $0x58] sm:$0xff]
    %v386 = vld [vmem:[%s373 + $0x60] sm:$0xff]
    %v387 = vld [vmem:[%s373 + $0x68] sm:$0xff]
    %v388 = vld [vmem:[%s373 + $0x70] sm:$0xff]
    %v389 = vld [vmem:[%s373 + $0x78] sm:$0xff]
    %v390 = vld [vmem:[%s373 + $0x80] sm:$0xff]
    %v391 = vld [vmem:[%s373 + $0x88] sm:$0xff]
    %v392 = vld [vmem:[%s373 + $0x90] sm:$0xff]
    %v393 = vld [vmem:[%s373 + $0x98] sm:$0xff]
    %v394 = vld [vmem:[%s373 + $0xa0] sm:$0xff]
    %v395 = vld [vmem:[%s373 + $0xa8] sm:$0xff]
    %v396 = vld [vmem:[%s373 + $0xb0] sm:$0xff]
    %v397 = vld [vmem:[%s373 + $0xb8] sm:$0xff]
    %v398 = vld [vmem:[%s373 + $0xc0] sm:$0xff]
    %v399 = vld [vmem:[%s373 + $0xc8] sm:$0xff]
    %v400 = vld [vmem:[%s373 + $0xd0] sm:$0xff]
    %v401 = vld [vmem:[%s373 + $0xd8] sm:$0xff]
    %v402 = vld [vmem:[%s373 + $0xe0] sm:$0xff]
    %v403 = vld [vmem:[%s373 + $0xe8] sm:$0xff]
    %v404 = vld [vmem:[%s373 + $0xf0] sm:$0xff]
    %v405 = vld [vmem:[%s373 + $0xf8] sm:$0xff]
    %v407 = vlaneseq
    %v408 = vshrl.u32 %v407, 7
    %v409 = vsub.s32 0, %v408
    %v410 = vrot.slane %v38, %v409
    %v411 = vlaneseq
    %v412 = vshrl.u32 %v411, 7
    %v413 = vsub.s32 1, %v412
    %v414 = vrot.slane %v38, %v413
    %v449 = vunpack.c.l.b16 %v374
    %v450 = vunpack.c.h.b16 %v374
    %v451 = vunpack.c.l.b16 %v375
    %v452 = vunpack.c.h.b16 %v375
    %v453 = vunpack.c.l.b16 %v376
    %v454 = vunpack.c.h.b16 %v376
    %v455 = vunpack.c.l.b16 %v377
    %v456 = vunpack.c.h.b16 %v377
    %v457 = vunpack.c.l.b16 %v378
    %v458 = vunpack.c.h.b16 %v378
    %v459 = vunpack.c.l.b16 %v379
    %v460 = vunpack.c.h.b16 %v379
    %v461 = vunpack.c.l.b16 %v380
    %v462 = vunpack.c.h.b16 %v380
    %v463 = vunpack.c.l.b16 %v381
    %v464 = vunpack.c.h.b16 %v381
    %v465 = vunpack.c.l.b16 %v382
    %v466 = vunpack.c.h.b16 %v382
    %v467 = vunpack.c.l.b16 %v383
    %v468 = vunpack.c.h.b16 %v383
    %v469 = vunpack.c.l.b16 %v384
    %v470 = vunpack.c.h.b16 %v384
    %v471 = vunpack.c.l.b16 %v385
    %v472 = vunpack.c.h.b16 %v385
    %v473 = vunpack.c.l.b16 %v386
    %v474 = vunpack.c.h.b16 %v386
    %v475 = vunpack.c.l.b16 %v387
    %v476 = vunpack.c.h.b16 %v387
    %v477 = vunpack.c.l.b16 %v388
    %v478 = vunpack.c.h.b16 %v388
    %v479 = vunpack.c.l.b16 %v389
    %v480 = vunpack.c.h.b16 %v389
    %v481 = vunpack.c.l.b16 %v390
    %v482 = vunpack.c.h.b16 %v390
    %v483 = vunpack.c.l.b16 %v391
    %v484 = vunpack.c.h.b16 %v391
    %v485 = vunpack.c.l.b16 %v392
    %v486 = vunpack.c.h.b16 %v392
    %v487 = vunpack.c.l.b16 %v393
    %v488 = vunpack.c.h.b16 %v393
    %v489 = vunpack.c.l.b16 %v394
    %v490 = vunpack.c.h.b16 %v394
    %v491 = vunpack.c.l.b16 %v395
    %v492 = vunpack.c.h.b16 %v395
    %v493 = vunpack.c.l.b16 %v396
    %v494 = vunpack.c.h.b16 %v396
    %v495 = vunpack.c.l.b16 %v397
    %v496 = vunpack.c.h.b16 %v397
    %v497 = vunpack.c.l.b16 %v398
    %v498 = vunpack.c.h.b16 %v398
    %v499 = vunpack.c.l.b16 %v399
    %v500 = vunpack.c.h.b16 %v399
    %v501 = vunpack.c.l.b16 %v400
    %v502 = vunpack.c.h.b16 %v400
    %v503 = vunpack.c.l.b16 %v401
    %v504 = vunpack.c.h.b16 %v401
    %v505 = vunpack.c.l.b16 %v402
    %v506 = vunpack.c.h.b16 %v402
    %v507 = vunpack.c.l.b16 %v403
    %v508 = vunpack.c.h.b16 %v403
    %v509 = vunpack.c.l.b16 %v404
    %v510 = vunpack.c.h.b16 %v404
    %v511 = vunpack.c.l.b16 %v405
    %v512 = vunpack.c.h.b16 %v405
    %v513 = vpack.c.b16 %v451, %v449
    %v514 = vpack.c.b16 %v452, %v450
    %v515 = vpack.c.b16 %v455, %v453
    %v516 = vpack.c.b16 %v456, %v454
    %v517 = vpack.c.b16 %v459, %v457
    %v518 = vpack.c.b16 %v460, %v458
    %v519 = vpack.c.b16 %v463, %v461
    %v520 = vpack.c.b16 %v464, %v462
    %v521 = vpack.c.b16 %v467, %v465
    %v522 = vpack.c.b16 %v468, %v466
    %v523 = vpack.c.b16 %v471, %v469
    %v524 = vpack.c.b16 %v472, %v470
    %v525 = vpack.c.b16 %v475, %v473
    %v526 = vpack.c.b16 %v476, %v474
    %v527 = vpack.c.b16 %v479, %v477
    %v528 = vpack.c.b16 %v480, %v478
    %v529 = vpack.c.b16 %v483, %v481
    %v530 = vpack.c.b16 %v484, %v482
    %v531 = vpack.c.b16 %v487, %v485
    %v532 = vpack.c.b16 %v488, %v486
    %v533 = vpack.c.b16 %v491, %v489
    %v534 = vpack.c.b16 %v492, %v490
    %v535 = vpack.c.b16 %v495, %v493
    %v536 = vpack.c.b16 %v496, %v494
    %v537 = vpack.c.b16 %v499, %v497
    %v538 = vpack.c.b16 %v500, %v498
    %v539 = vpack.c.b16 %v503, %v501
    %v540 = vpack.c.b16 %v504, %v502
    %v541 = vpack.c.b16 %v507, %v505
    %v542 = vpack.c.b16 %v508, %v506
    %v543 = vpack.c.b16 %v511, %v509
    %v544 = vpack.c.b16 %v512, %v510
    %577 = vmatprep.subr.bf16.mxu0 %v528
    %578 = vmatpush1.bf16.msra.mxu0 %v527
    %579 = vmatprep.subr.bf16.mxu0 %v526
    %580 = vmatpush1.bf16.msra.mxu0 %v525
    %581 = vmatprep.subr.bf16.mxu0 %v524
    %582 = vmatpush1.bf16.msra.mxu0 %v523
    %583 = vmatprep.subr.bf16.mxu0 %v522
    %584 = vmatpush1.bf16.msra.mxu0 %v521
    %585 = vmatprep.subr.bf16.mxu0 %v520
    %586 = vmatpush1.bf16.msra.mxu0 %v519
    %587 = vmatprep.subr.bf16.mxu0 %v518
    %588 = vmatpush1.bf16.msra.mxu0 %v517
    %589 = vmatprep.subr.bf16.mxu0 %v516
    %590 = vmatpush1.bf16.msra.mxu0 %v515
    %591 = vmatprep.subr.bf16.mxu0 %v514
    %592 = vmatpush1.bf16.msra.mxu0 %v513
    %593 = vmatprep.subr.bf16.mxu0 %v544
    %594 = vmatpush2.bf16.msra.mxu0 %v543
    %595 = vmatprep.subr.bf16.mxu0 %v542
    %596 = vmatpush2.bf16.msra.mxu0 %v541
    %597 = vmatprep.subr.bf16.mxu0 %v540
    %598 = vmatpush2.bf16.msra.mxu0 %v539
    %599 = vmatprep.subr.bf16.mxu0 %v538
    %600 = vmatpush2.bf16.msra.mxu0 %v537
    %601 = vmatprep.subr.bf16.mxu0 %v536
    %602 = vmatpush2.bf16.msra.mxu0 %v535
    %603 = vmatprep.subr.bf16.mxu0 %v534
    %604 = vmatpush2.bf16.msra.mxu0 %v533
    %605 = vmatprep.subr.bf16.mxu0 %v532
    %606 = vmatpush2.bf16.msra.mxu0 %v531
    %607 = vmatprep.subr.bf16.mxu0 %v530
    %608 = vmatpush2.bf16.msra.mxu0 %v529
    %609 = vmatprep.mubr.bf16.mxu0 %v372
    %610 = vmatmul.mubr.bf16.gmra.mxu0 %v371
    %v611 = vpop.f32.mrf.mxu0
    %v612 = vadd.f32 %v410, %v611
    %v613 = vpop.f32.mrf.mxu0
    %v614 = vadd.f32 %v414, %v613
    %v615 = vpop.f32.mrf.mxu0
    %v616 = vpop.f32.mrf.mxu0
    %617 = vdwg.mxu0
    %v618 = vmax.f32 %v612, 0.0
    %v619 = vmax.f32 %v614, 0.0
    %v621 = vlaneseq
    %v622 = vshrl.u32 %v621, 7
    %v623 = vsub.s32 0, %v622
    %v624 = vrot.slane %v40, %v623
    %v625 = vlaneseq
    %v626 = vshrl.u32 %v625, 7
    %v627 = vsub.s32 1, %v626
    %v628 = vrot.slane %v40, %v627
    %v631 = vmul.f32 %v618, %v624
    %v632 = vmul.f32 %v619, %v628
    %vm633 = vcmask 1041408
    %v634 = vsel %vm633, %v631, 0.0
    %v635 = vsel %vm633, %v632, 0.0
    %v636 = vadd.f32 %v634, %v635
    %637 = vadd.xlane.f32.xlu0 %v636
    %v638 = vpop.xlane.xlu0 %637
    %v639 = vadd.f32 %v638, %v41
    %s640 = scalar_lea.vmem %s3, 16
    %v641 = vld [vmem:[%s640] ss:$8 sm:$0x3]
    %s642 = scalar_lea.vmem %s640, 1
    %v643 = vld [vmem:[%s642] ss:$8 sm:$0x3]
    %s644 = scalar_lea.vmem %s640, 2
    %v645 = vld [vmem:[%s644] ss:$8 sm:$0x3]
    %s646 = scalar_lea.vmem %s640, 3
    %v647 = vld [vmem:[%s646] ss:$8 sm:$0x3]
    %v648 = vld [vmem:[%s640 + $0x4] ss:$0 sm:$0xff]
    %s649 = scalar_lea.vmem %s1, 24
    %v650 = vld [vmem:[%s649] sm:$0xff]
    %v651 = vld [vmem:[%s649 + $0x8] sm:$0xff]
    %v652 = vld [vmem:[%s649 + $0x10] sm:$0xff]
    %v654 = vlaneseq
    %v655 = vshrl.u32 %v654, 7
    %v656 = vsub.s32 0, %v655
    %v657 = vrot.slane %v641, %v656
    %v658 = vlaneseq
    %v659 = vshrl.u32 %v658, 7
    %v660 = vsub.s32 1, %v659
    %v661 = vrot.slane %v641, %v660
    %v667 = vunpack.c.l.b16 %v650
    %v668 = vunpack.c.h.b16 %v650
    %v669 = vunpack.c.l.b16 %v651
    %v670 = vunpack.c.h.b16 %v651
    %v671 = vunpack.c.l.b16 %v652
    %v672 = vunpack.c.h.b16 %v652
    %v673 = vpack.c.b16 %v669, %v667
    %v674 = vpack.c.b16 %v670, %v668
    %v675 = vpack.c.b16 %v671, %v671
    %v676 = vpack.c.b16 %v672, %v672
    %v680 = vsel %vm75, %v675, 0
    %v683 = vsel %vm75, %v676, 0
    %685 = vmatprep.subr.bf16.mxu0 0
    %686 = vmatpush1.bf16.msra.mxu0 0
    %687 = vmatprep.subr.bf16.mxu0 0
    %688 = vmatpush1.bf16.msra.mxu0 0
    %689 = vmatprep.subr.bf16.mxu0 0
    %690 = vmatpush1.bf16.msra.mxu0 0
    %691 = vmatprep.subr.bf16.mxu0 0
    %692 = vmatpush1.bf16.msra.mxu0 0
    %693 = vmatprep.subr.bf16.mxu0 0
    %694 = vmatpush1.bf16.msra.mxu0 0
    %695 = vmatprep.subr.bf16.mxu0 0
    %696 = vmatpush1.bf16.msra.mxu0 0
    %697 = vmatprep.subr.bf16.mxu0 %v683
    %698 = vmatpush1.bf16.msra.mxu0 %v680
    %699 = vmatprep.subr.bf16.mxu0 %v674
    %700 = vmatpush1.bf16.msra.mxu0 %v673
    %701 = vmatprep.subr.bf16.mxu0 0
    %702 = vmatpush2.bf16.msra.mxu0 0
    %703 = vmatprep.subr.bf16.mxu0 0
    %704 = vmatpush2.bf16.msra.mxu0 0
    %705 = vmatprep.subr.bf16.mxu0 0
    %706 = vmatpush2.bf16.msra.mxu0 0
    %707 = vmatprep.subr.bf16.mxu0 0
    %708 = vmatpush2.bf16.msra.mxu0 0
    %709 = vmatprep.subr.bf16.mxu0 0
    %710 = vmatpush2.bf16.msra.mxu0 0
    %711 = vmatprep.subr.bf16.mxu0 0
    %712 = vmatpush2.bf16.msra.mxu0 0
    %713 = vmatprep.subr.bf16.mxu0 0
    %714 = vmatpush2.bf16.msra.mxu0 0
    %715 = vmatprep.subr.bf16.mxu0 0
    %716 = vmatpush2.bf16.msra.mxu0 0
    %717 = vmatprep.mubr.bf16.mxu0 0
    %718 = vmatmul.mubr.bf16.gmra.mxu0 %v73
    %v719 = vpop.f32.mrf.mxu0
    %v720 = vadd.f32 %v657, %v719
    %v721 = vpop.f32.mrf.mxu0
    %v722 = vadd.f32 %v661, %v721
    %v723 = vpop.f32.mrf.mxu0
    %v724 = vpop.f32.mrf.mxu0
    %725 = vdwg.mxu0
    %v726 = vmax.f32 %v720, 0.0
    %v727 = vmax.f32 %v722, 0.0
    %v728 = vpack.c.bf16 %v726, %v726
    %v729 = vpack.c.bf16 %v727, %v727
    %s730 = scalar_lea.vmem [#allocation2], 512
    %v731 = vld [vmem:[%s730] sm:$0xff]
    %v732 = vld [vmem:[%s730 + $0x8] sm:$0xff]
    %v733 = vld [vmem:[%s730 + $0x10] sm:$0xff]
    %v734 = vld [vmem:[%s730 + $0x18] sm:$0xff]
    %v735 = vld [vmem:[%s730 + $0x20] sm:$0xff]
    %v736 = vld [vmem:[%s730 + $0x28] sm:$0xff]
    %v737 = vld [vmem:[%s730 + $0x30] sm:$0xff]
    %v738 = vld [vmem:[%s730 + $0x38] sm:$0xff]
    %v739 = vld [vmem:[%s730 + $0x40] sm:$0xff]
    %v740 = vld [vmem:[%s730 + $0x48] sm:$0xff]
    %v741 = vld [vmem:[%s730 + $0x50] sm:$0xff]
    %v742 = vld [vmem:[%s730 + $0x58] sm:$0xff]
    %v743 = vld [vmem:[%s730 + $0x60] sm:$0xff]
    %v744 = vld [vmem:[%s730 + $0x68] sm:$0xff]
    %v745 = vld [vmem:[%s730 + $0x70] sm:$0xff]
    %v746 = vld [vmem:[%s730 + $0x78] sm:$0xff]
    %v747 = vld [vmem:[%s730 + $0x80] sm:$0xff]
    %v748 = vld [vmem:[%s730 + $0x88] sm:$0xff]
    %v749 = vld [vmem:[%s730 + $0x90] sm:$0xff]
    %v750 = vld [vmem:[%s730 + $0x98] sm:$0xff]
    %v751 = vld [vmem:[%s730 + $0xa0] sm:$0xff]
    %v752 = vld [vmem:[%s730 + $0xa8] sm:$0xff]
    %v753 = vld [vmem:[%s730 + $0xb0] sm:$0xff]
    %v754 = vld [vmem:[%s730 + $0xb8] sm:$0xff]
    %v755 = vld [vmem:[%s730 + $0xc0] sm:$0xff]
    %v756 = vld [vmem:[%s730 + $0xc8] sm:$0xff]
    %v757 = vld [vmem:[%s730 + $0xd0] sm:$0xff]
    %v758 = vld [vmem:[%s730 + $0xd8] sm:$0xff]
    %v759 = vld [vmem:[%s730 + $0xe0] sm:$0xff]
    %v760 = vld [vmem:[%s730 + $0xe8] sm:$0xff]
    %v761 = vld [vmem:[%s730 + $0xf0] sm:$0xff]
    %v762 = vld [vmem:[%s730 + $0xf8] sm:$0xff]
    %v764 = vlaneseq
    %v765 = vshrl.u32 %v764, 7
    %v766 = vsub.s32 0, %v765
    %v767 = vrot.slane %v643, %v766
    %v768 = vlaneseq
    %v769 = vshrl.u32 %v768, 7
    %v770 = vsub.s32 1, %v769
    %v771 = vrot.slane %v643, %v770
    %v806 = vunpack.c.l.b16 %v731
    %v807 = vunpack.c.h.b16 %v731
    %v808 = vunpack.c.l.b16 %v732
    %v809 = vunpack.c.h.b16 %v732
    %v810 = vunpack.c.l.b16 %v733
    %v811 = vunpack.c.h.b16 %v733
    %v812 = vunpack.c.l.b16 %v734
    %v813 = vunpack.c.h.b16 %v734
    %v814 = vunpack.c.l.b16 %v735
    %v815 = vunpack.c.h.b16 %v735
    %v816 = vunpack.c.l.b16 %v736
    %v817 = vunpack.c.h.b16 %v736
    %v818 = vunpack.c.l.b16 %v737
    %v819 = vunpack.c.h.b16 %v737
    %v820 = vunpack.c.l.b16 %v738
    %v821 = vunpack.c.h.b16 %v738
    %v822 = vunpack.c.l.b16 %v739
    %v823 = vunpack.c.h.b16 %v739
    %v824 = vunpack.c.l.b16 %v740
    %v825 = vunpack.c.h.b16 %v740
    %v826 = vunpack.c.l.b16 %v741
    %v827 = vunpack.c.h.b16 %v741
    %v828 = vunpack.c.l.b16 %v742
    %v829 = vunpack.c.h.b16 %v742
    %v830 = vunpack.c.l.b16 %v743
    %v831 = vunpack.c.h.b16 %v743
    %v832 = vunpack.c.l.b16 %v744
    %v833 = vunpack.c.h.b16 %v744
    %v834 = vunpack.c.l.b16 %v745
    %v835 = vunpack.c.h.b16 %v745
    %v836 = vunpack.c.l.b16 %v746
    %v837 = vunpack.c.h.b16 %v746
    %v838 = vunpack.c.l.b16 %v747
    %v839 = vunpack.c.h.b16 %v747
    %v840 = vunpack.c.l.b16 %v748
    %v841 = vunpack.c.h.b16 %v748
    %v842 = vunpack.c.l.b16 %v749
    %v843 = vunpack.c.h.b16 %v749
    %v844 = vunpack.c.l.b16 %v750
    %v845 = vunpack.c.h.b16 %v750
    %v846 = vunpack.c.l.b16 %v751
    %v847 = vunpack.c.h.b16 %v751
    %v848 = vunpack.c.l.b16 %v752
    %v849 = vunpack.c.h.b16 %v752
    %v850 = vunpack.c.l.b16 %v753
    %v851 = vunpack.c.h.b16 %v753
    %v852 = vunpack.c.l.b16 %v754
    %v853 = vunpack.c.h.b16 %v754
    %v854 = vunpack.c.l.b16 %v755
    %v855 = vunpack.c.h.b16 %v755
    %v856 = vunpack.c.l.b16 %v756
    %v857 = vunpack.c.h.b16 %v756
    %v858 = vunpack.c.l.b16 %v757
    %v859 = vunpack.c.h.b16 %v757
    %v860 = vunpack.c.l.b16 %v758
    %v861 = vunpack.c.h.b16 %v758
    %v862 = vunpack.c.l.b16 %v759
    %v863 = vunpack.c.h.b16 %v759
    %v864 = vunpack.c.l.b16 %v760
    %v865 = vunpack.c.h.b16 %v760
    %v866 = vunpack.c.l.b16 %v761
    %v867 = vunpack.c.h.b16 %v761
    %v868 = vunpack.c.l.b16 %v762
    %v869 = vunpack.c.h.b16 %v762
    %v870 = vpack.c.b16 %v808, %v806
    %v871 = vpack.c.b16 %v809, %v807
    %v872 = vpack.c.b16 %v812, %v810
    %v873 = vpack.c.b16 %v813, %v811
    %v874 = vpack.c.b16 %v816, %v814
    %v875 = vpack.c.b16 %v817, %v815
    %v876 = vpack.c.b16 %v820, %v818
    %v877 = vpack.c.b16 %v821, %v819
    %v878 = vpack.c.b16 %v824, %v822
    %v879 = vpack.c.b16 %v825, %v823
    %v880 = vpack.c.b16 %v828, %v826
    %v881 = vpack.c.b16 %v829, %v827
    %v882 = vpack.c.b16 %v832, %v830
    %v883 = vpack.c.b16 %v833, %v831
    %v884 = vpack.c.b16 %v836, %v834
    %v885 = vpack.c.b16 %v837, %v835
    %v886 = vpack.c.b16 %v840, %v838
    %v887 = vpack.c.b16 %v841, %v839
    %v888 = vpack.c.b16 %v844, %v842
    %v889 = vpack.c.b16 %v845, %v843
    %v890 = vpack.c.b16 %v848, %v846
    %v891 = vpack.c.b16 %v849, %v847
    %v892 = vpack.c.b16 %v852, %v850
    %v893 = vpack.c.b16 %v853, %v851
    %v894 = vpack.c.b16 %v856, %v854
    %v895 = vpack.c.b16 %v857, %v855
    %v896 = vpack.c.b16 %v860, %v858
    %v897 = vpack.c.b16 %v861, %v859
    %v898 = vpack.c.b16 %v864, %v862
    %v899 = vpack.c.b16 %v865, %v863
    %v900 = vpack.c.b16 %v868, %v866
    %v901 = vpack.c.b16 %v869, %v867
    %934 = vmatprep.subr.bf16.mxu0 %v885
    %935 = vmatpush1.bf16.msra.mxu0 %v884
    %936 = vmatprep.subr.bf16.mxu0 %v883
    %937 = vmatpush1.bf16.msra.mxu0 %v882
    %938 = vmatprep.subr.bf16.mxu0 %v881
    %939 = vmatpush1.bf16.msra.mxu0 %v880
    %940 = vmatprep.subr.bf16.mxu0 %v879
    %941 = vmatpush1.bf16.msra.mxu0 %v878
    %942 = vmatprep.subr.bf16.mxu0 %v877
    %943 = vmatpush1.bf16.msra.mxu0 %v876
    %944 = vmatprep.subr.bf16.mxu0 %v875
    %945 = vmatpush1.bf16.msra.mxu0 %v874
    %946 = vmatprep.subr.bf16.mxu0 %v873
    %947 = vmatpush1.bf16.msra.mxu0 %v872
    %948 = vmatprep.subr.bf16.mxu0 %v871
    %949 = vmatpush1.bf16.msra.mxu0 %v870
    %950 = vmatprep.subr.bf16.mxu0 %v901
    %951 = vmatpush2.bf16.msra.mxu0 %v900
    %952 = vmatprep.subr.bf16.mxu0 %v899
    %953 = vmatpush2.bf16.msra.mxu0 %v898
    %954 = vmatprep.subr.bf16.mxu0 %v897
    %955 = vmatpush2.bf16.msra.mxu0 %v896
    %956 = vmatprep.subr.bf16.mxu0 %v895
    %957 = vmatpush2.bf16.msra.mxu0 %v894
    %958 = vmatprep.subr.bf16.mxu0 %v893
    %959 = vmatpush2.bf16.msra.mxu0 %v892
    %960 = vmatprep.subr.bf16.mxu0 %v891
    %961 = vmatpush2.bf16.msra.mxu0 %v890
    %962 = vmatprep.subr.bf16.mxu0 %v889
    %963 = vmatpush2.bf16.msra.mxu0 %v888
    %964 = vmatprep.subr.bf16.mxu0 %v887
    %965 = vmatpush2.bf16.msra.mxu0 %v886
    %966 = vmatprep.mubr.bf16.mxu0 %v729
    %967 = vmatmul.mubr.bf16.gmra.mxu0 %v728
    %v968 = vpop.f32.mrf.mxu0
    %v969 = vadd.f32 %v767, %v968
    %v970 = vpop.f32.mrf.mxu0
    %v971 = vadd.f32 %v771, %v970
    %v972 = vpop.f32.mrf.mxu0
    %v973 = vpop.f32.mrf.mxu0
    %974 = vdwg.mxu0
    %v975 = vpack.c.bf16 %v969, %v969
    %v976 = vpack.c.bf16 %v971, %v971
    %s977 = scalar_lea.vmem [#allocation2], 768
    %v978 = vld [vmem:[%s977] sm:$0xff]
    %v979 = vld [vmem:[%s977 + $0x8] sm:$0xff]
    %v980 = vld [vmem:[%s977 + $0x10] sm:$0xff]
    %v981 = vld [vmem:[%s977 + $0x18] sm:$0xff]
    %v982 = vld [vmem:[%s977 + $0x20] sm:$0xff]
    %v983 = vld [vmem:[%s977 + $0x28] sm:$0xff]
    %v984 = vld [vmem:[%s977 + $0x30] sm:$0xff]
    %v985 = vld [vmem:[%s977 + $0x38] sm:$0xff]
    %v986 = vld [vmem:[%s977 + $0x40] sm:$0xff]
    %v987 = vld [vmem:[%s977 + $0x48] sm:$0xff]
    %v988 = vld [vmem:[%s977 + $0x50] sm:$0xff]
    %v989 = vld [vmem:[%s977 + $0x58] sm:$0xff]
    %v990 = vld [vmem:[%s977 + $0x60] sm:$0xff]
    %v991 = vld [vmem:[%s977 + $0x68] sm:$0xff]
    %v992 = vld [vmem:[%s977 + $0x70] sm:$0xff]
    %v993 = vld [vmem:[%s977 + $0x78] sm:$0xff]
    %v994 = vld [vmem:[%s977 + $0x80] sm:$0xff]
    %v995 = vld [vmem:[%s977 + $0x88] sm:$0xff]
    %v996 = vld [vmem:[%s977 + $0x90] sm:$0xff]
    %v997 = vld [vmem:[%s977 + $0x98] sm:$0xff]
    %v998 = vld [vmem:[%s977 + $0xa0] sm:$0xff]
    %v999 = vld [vmem:[%s977 + $0xa8] sm:$0xff]
    %v1000 = vld [vmem:[%s977 + $0xb0] sm:$0xff]
    %v1001 = vld [vmem:[%s977 + $0xb8] sm:$0xff]
    %v1002 = vld [vmem:[%s977 + $0xc0] sm:$0xff]
    %v1003 = vld [vmem:[%s977 + $0xc8] sm:$0xff]
    %v1004 = vld [vmem:[%s977 + $0xd0] sm:$0xff]
    %v1005 = vld [vmem:[%s977 + $0xd8] sm:$0xff]
    %v1006 = vld [vmem:[%s977 + $0xe0] sm:$0xff]
    %v1007 = vld [vmem:[%s977 + $0xe8] sm:$0xff]
    %v1008 = vld [vmem:[%s977 + $0xf0] sm:$0xff]
    %v1009 = vld [vmem:[%s977 + $0xf8] sm:$0xff]
    %v1011 = vlaneseq
    %v1012 = vshrl.u32 %v1011, 7
    %v1013 = vsub.s32 0, %v1012
    %v1014 = vrot.slane %v645, %v1013
    %v1015 = vlaneseq
    %v1016 = vshrl.u32 %v1015, 7
    %v1017 = vsub.s32 1, %v1016
    %v1018 = vrot.slane %v645, %v1017
    %v1053 = vunpack.c.l.b16 %v978
    %v1054 = vunpack.c.h.b16 %v978
    %v1055 = vunpack.c.l.b16 %v979
    %v1056 = vunpack.c.h.b16 %v979
    %v1057 = vunpack.c.l.b16 %v980
    %v1058 = vunpack.c.h.b16 %v980
    %v1059 = vunpack.c.l.b16 %v981
    %v1060 = vunpack.c.h.b16 %v981
    %v1061 = vunpack.c.l.b16 %v982
    %v1062 = vunpack.c.h.b16 %v982
    %v1063 = vunpack.c.l.b16 %v983
    %v1064 = vunpack.c.h.b16 %v983
    %v1065 = vunpack.c.l.b16 %v984
    %v1066 = vunpack.c.h.b16 %v984
    %v1067 = vunpack.c.l.b16 %v985
    %v1068 = vunpack.c.h.b16 %v985
    %v1069 = vunpack.c.l.b16 %v986
    %v1070 = vunpack.c.h.b16 %v986
    %v1071 = vunpack.c.l.b16 %v987
    %v1072 = vunpack.c.h.b16 %v987
    %v1073 = vunpack.c.l.b16 %v988
    %v1074 = vunpack.c.h.b16 %v988
    %v1075 = vunpack.c.l.b16 %v989
    %v1076 = vunpack.c.h.b16 %v989
    %v1077 = vunpack.c.l.b16 %v990
    %v1078 = vunpack.c.h.b16 %v990
    %v1079 = vunpack.c.l.b16 %v991
    %v1080 = vunpack.c.h.b16 %v991
    %v1081 = vunpack.c.l.b16 %v992
    %v1082 = vunpack.c.h.b16 %v992
    %v1083 = vunpack.c.l.b16 %v993
    %v1084 = vunpack.c.h.b16 %v993
    %v1085 = vunpack.c.l.b16 %v994
    %v1086 = vunpack.c.h.b16 %v994
    %v1087 = vunpack.c.l.b16 %v995
    %v1088 = vunpack.c.h.b16 %v995
    %v1089 = vunpack.c.l.b16 %v996
    %v1090 = vunpack.c.h.b16 %v996
    %v1091 = vunpack.c.l.b16 %v997
    %v1092 = vunpack.c.h.b16 %v997
    %v1093 = vunpack.c.l.b16 %v998
    %v1094 = vunpack.c.h.b16 %v998
    %v1095 = vunpack.c.l.b16 %v999
    %v1096 = vunpack.c.h.b16 %v999
    %v1097 = vunpack.c.l.b16 %v1000
    %v1098 = vunpack.c.h.b16 %v1000
    %v1099 = vunpack.c.l.b16 %v1001
    %v1100 = vunpack.c.h.b16 %v1001
    %v1101 = vunpack.c.l.b16 %v1002
    %v1102 = vunpack.c.h.b16 %v1002
    %v1103 = vunpack.c.l.b16 %v1003
    %v1104 = vunpack.c.h.b16 %v1003
    %v1105 = vunpack.c.l.b16 %v1004
    %v1106 = vunpack.c.h.b16 %v1004
    %v1107 = vunpack.c.l.b16 %v1005
    %v1108 = vunpack.c.h.b16 %v1005
    %v1109 = vunpack.c.l.b16 %v1006
    %v1110 = vunpack.c.h.b16 %v1006
    %v1111 = vunpack.c.l.b16 %v1007
    %v1112 = vunpack.c.h.b16 %v1007
    %v1113 = vunpack.c.l.b16 %v1008
    %v1114 = vunpack.c.h.b16 %v1008
    %v1115 = vunpack.c.l.b16 %v1009
    %v1116 = vunpack.c.h.b16 %v1009
    %v1117 = vpack.c.b16 %v1055, %v1053
    %v1118 = vpack.c.b16 %v1056, %v1054
    %v1119 = vpack.c.b16 %v1059, %v1057
    %v1120 = vpack.c.b16 %v1060, %v1058
    %v1121 = vpack.c.b16 %v1063, %v1061
    %v1122 = vpack.c.b16 %v1064, %v1062
    %v1123 = vpack.c.b16 %v1067, %v1065
    %v1124 = vpack.c.b16 %v1068, %v1066
    %v1125 = vpack.c.b16 %v1071, %v1069
    %v1126 = vpack.c.b16 %v1072, %v1070
    %v1127 = vpack.c.b16 %v1075, %v1073
    %v1128 = vpack.c.b16 %v1076, %v1074
    %v1129 = vpack.c.b16 %v1079, %v1077
    %v1130 = vpack.c.b16 %v1080, %v1078
    %v1131 = vpack.c.b16 %v1083, %v1081
    %v1132 = vpack.c.b16 %v1084, %v1082
    %v1133 = vpack.c.b16 %v1087, %v1085
    %v1134 = vpack.c.b16 %v1088, %v1086
    %v1135 = vpack.c.b16 %v1091, %v1089
    %v1136 = vpack.c.b16 %v1092, %v1090
    %v1137 = vpack.c.b16 %v1095, %v1093
    %v1138 = vpack.c.b16 %v1096, %v1094
    %v1139 = vpack.c.b16 %v1099, %v1097
    %v1140 = vpack.c.b16 %v1100, %v1098
    %v1141 = vpack.c.b16 %v1103, %v1101
    %v1142 = vpack.c.b16 %v1104, %v1102
    %v1143 = vpack.c.b16 %v1107, %v1105
    %v1144 = vpack.c.b16 %v1108, %v1106
    %v1145 = vpack.c.b16 %v1111, %v1109
    %v1146 = vpack.c.b16 %v1112, %v1110
    %v1147 = vpack.c.b16 %v1115, %v1113
    %v1148 = vpack.c.b16 %v1116, %v1114
    %1181 = vmatprep.subr.bf16.mxu0 %v1132
    %1182 = vmatpush1.bf16.msra.mxu0 %v1131
    %1183 = vmatprep.subr.bf16.mxu0 %v1130
    %1184 = vmatpush1.bf16.msra.mxu0 %v1129
    %1185 = vmatprep.subr.bf16.mxu0 %v1128
    %1186 = vmatpush1.bf16.msra.mxu0 %v1127
    %1187 = vmatprep.subr.bf16.mxu0 %v1126
    %1188 = vmatpush1.bf16.msra.mxu0 %v1125
    %1189 = vmatprep.subr.bf16.mxu0 %v1124
    %1190 = vmatpush1.bf16.msra.mxu0 %v1123
    %1191 = vmatprep.subr.bf16.mxu0 %v1122
    %1192 = vmatpush1.bf16.msra.mxu0 %v1121
    %1193 = vmatprep.subr.bf16.mxu0 %v1120
    %1194 = vmatpush1.bf16.msra.mxu0 %v1119
    %1195 = vmatprep.subr.bf16.mxu0 %v1118
    %1196 = vmatpush1.bf16.msra.mxu0 %v1117
    %1197 = vmatprep.subr.bf16.mxu0 %v1148
    %1198 = vmatpush2.bf16.msra.mxu0 %v1147
    %1199 = vmatprep.subr.bf16.mxu0 %v1146
    %1200 = vmatpush2.bf16.msra.mxu0 %v1145
    %1201 = vmatprep.subr.bf16.mxu0 %v1144
    %1202 = vmatpush2.bf16.msra.mxu0 %v1143
    %1203 = vmatprep.subr.bf16.mxu0 %v1142
    %1204 = vmatpush2.bf16.msra.mxu0 %v1141
    %1205 = vmatprep.subr.bf16.mxu0 %v1140
    %1206 = vmatpush2.bf16.msra.mxu0 %v1139
    %1207 = vmatprep.subr.bf16.mxu0 %v1138
    %1208 = vmatpush2.bf16.msra.mxu0 %v1137
    %1209 = vmatprep.subr.bf16.mxu0 %v1136
    %1210 = vmatpush2.bf16.msra.mxu0 %v1135
    %1211 = vmatprep.subr.bf16.mxu0 %v1134
    %1212 = vmatpush2.bf16.msra.mxu0 %v1133
    %1213 = vmatprep.mubr.bf16.mxu0 %v976
    %1214 = vmatmul.mubr.bf16.gmra.mxu0 %v975
    %v1215 = vpop.f32.mrf.mxu0
    %v1216 = vadd.f32 %v1014, %v1215
    %v1217 = vpop.f32.mrf.mxu0
    %v1218 = vadd.f32 %v1018, %v1217
    %v1219 = vpop.f32.mrf.mxu0
    %v1220 = vpop.f32.mrf.mxu0
    %1221 = vdwg.mxu0
    %v1222 = vmax.f32 %v1216, 0.0
    %v1223 = vmax.f32 %v1218, 0.0
    %v1225 = vlaneseq
    %v1226 = vshrl.u32 %v1225, 7
    %v1227 = vsub.s32 0, %v1226
    %v1228 = vrot.slane %v647, %v1227
    %v1229 = vlaneseq
    %v1230 = vshrl.u32 %v1229, 7
    %v1231 = vsub.s32 1, %v1230
    %v1232 = vrot.slane %v647, %v1231
    %v1235 = vmul.f32 %v1222, %v1228
    %v1236 = vmul.f32 %v1223, %v1232
    %v1237 = vsel %vm633, %v1235, 0.0
    %v1238 = vsel %vm633, %v1236, 0.0
    %v1239 = vadd.f32 %v1237, %v1238
    %1240 = vadd.xlane.f32.xlu0 %v1239
    %v1241 = vpop.xlane.xlu0 %1240
    %v1242 = vadd.f32 %v1241, %v648
    %1244 = vrot.lane.b32.xlu0 %v1242, 1
    %v1245 = vpop.permute.xlu0 %1244
    %vm1247 = vcmask 7168
    %v1248 = vsel %vm1247, %v639, %v1245
    %vm1249 = vcmask 9216
    %1250 = vst.msk [vmem:[%s4] sm:$0x3] %vm1249, %v1248
    // Predicated region
    $region22: #{critic_forward.1} parent=1 // pred_check
      _
    $region23: #{critic_forward.1} parent=1 // pred_check_branch
      %1252 = sbr.rel (0) target = $region25
    $region24: #{critic_forward.1} parent=1 // pred_region
      _
    $region25: #{critic_forward.1} parent=1 // pred_fallthru
      _
    // Predicated region
    $region26: #{critic_forward.1} parent=1 // pred_check
      _
    $region27: #{critic_forward.1} parent=1 // pred_check_branch
      %1254 = sbr.rel (0) target = $region29
    $region28: #{critic_forward.1} parent=1 // pred_region
      _
    $region29: #{critic_forward.1} parent=1 // pred_fallthru
      _
    %1255 = vsyncpa [#allocation3], 1

</llo_original>
